<compile_context>
chip_gen: v6e
topology: v6e:2x2x1
jax: 0.10.0
libtpu: 0.0.40
codegen_flags: <defaults>
</compile_context>

<pallas_src>
import functools

import numpy as np
import jax
import jax.numpy as jnp
from jax.experimental import pallas as pl
from jax.experimental.pallas import tpu as pltpu

LANE = 128  # TPU lane width


def _apply_act(h, act):
    if act == "relu":
        return jnp.maximum(h, 0.0)
    if act == "sigmoid":
        return jax.nn.sigmoid(h)
    if act == "tanh":
        return jnp.tanh(h)
    return h  # identity (final_activation=None)


# -----------------------------------------------------------------------------
# Fused Pallas kernel: all RGCN layers + per-graph first-node select
# -----------------------------------------------------------------------------
def fused_rgcn_select_kernel(*refs, num_rels, acts, out_lanes):
    """refs layout:
      refs[0]  : (G_pad, 1) int32 VMEM   base indices (first node per graph,
                                          -1 for padded rows)
      refs[1]  : (R, N, N)  bf16 VMEM    row-normalized per-relation adjacency
      refs[2]  : (N, F0)    f32  VMEM    node features
      refs[3:] : per layer (W_cat bf16 (f_in, Wpad), bias f32 (1, f_out))
                 W_cat = [W_self | W_0 | ... | W_{R-1}] zero-padded to Wpad
      refs[-1] : (G_pad, out_lanes) f32  output (wrapper slices real classes)
    """
    idx_ref = refs[0]
    a_ref = refs[1]
    x_ref = refs[2]
    out_ref = refs[-1]
    wb_refs = refs[3:-1]

    n = x_ref.shape[0]
    h = x_ref[...]                                  # f32, (N, F0)

    # Static Python unroll over layers (layer count is tiny & fixed).
    for li, act in enumerate(acts):
        w_ref = wb_refs[2 * li]                     # bf16 (f_in, Wpad)
        b_ref = wb_refs[2 * li + 1]                 # f32  (1, f_out)
        f_out = b_ref.shape[1]

        # (1) one lane-dense bf16 MXU matmul for self-loop + all relations:
        #     msg = h @ [W_self | W_0 | ... | W_{R-1}]   (f32 accumulation)
        msg = jnp.dot(h.astype(jnp.bfloat16), w_ref[...],
                      preferred_element_type=jnp.float32)   # (N, Wpad) f32

        # (2) self-loop message via VPU add + per-relation aggregation matmuls
        #     (no identity block in A, no stacked-msg VMEM copy).
        acc = msg[:, :f_out]
        for r in range(num_rels):
            c0 = (r + 1) * f_out
            m_r = msg[:, c0:c0 + f_out].astype(jnp.bfloat16)
            acc = acc + jnp.dot(a_ref[r], m_r,
                                preferred_element_type=jnp.float32)

        # bias add + activation kept in f32 (v5e has no bf16 VPU/EUP)
        h = _apply_act(acc + b_ref[...], act)       # (N, f_out) f32

    # SELECT_GNN unbatch loop: output[b, :] = logits[base_index[b], :]
    # Single broadcast-compare one-hot + matmul (OOB-safe: idx=-1 -> zero row).
    g_pad = out_ref.shape[0]
    col = jax.lax.broadcasted_iota(jnp.int32, (g_pad, n), 1)
    sel = (col == idx_ref[...]).astype(jnp.float32)          # (G_pad, N)
    picked = jnp.dot(sel, h, preferred_element_type=jnp.float32)  # (G_pad, C)

    pad = out_lanes - picked.shape[1]
    if pad > 0:
        # zero-padded lanes (NOT sigmoid(0)); one unmasked full-tile store
        picked = jnp.concatenate(
            [picked, jnp.zeros((g_pad, pad), jnp.float32)], axis=1)
    out_ref[...] = picked


# -----------------------------------------------------------------------------
# Host-side parameter fusion (done once, bf16)
# -----------------------------------------------------------------------------
def _fuse_params_bf16(params, num_rels):
    """Per layer: [W_self | W_0 | ...], total width zero-padded to 128 lanes."""
    fused = []
    for (w_rel, w_self, bias) in params:
        f_in, f_out = w_self.shape
        total = (num_rels + 1) * f_out
        total_pad = max(LANE, ((total + LANE - 1) // LANE) * LANE)
        w_cat = jnp.zeros((f_in, total_pad), jnp.float32)
        w_cat = w_cat.at[:, :f_out].set(w_self)
        for r in range(num_rels):
            c0 = (r + 1) * f_out
            w_cat = w_cat.at[:, c0:c0 + f_out].set(w_rel[r])
        fused.append((w_cat.astype(jnp.bfloat16),
                      jnp.asarray(bias, jnp.float32)))
    return fused


def make_select_gnn_forward(params, adj, n_classes):
    """Factory: fuses/casts parameters once, returns a jitted forward(x, idx)."""
    num_rels = adj.shape[0]
    num_layers = len(params)
    # hidden layers: `activation` (relu); last layer: final_activation (sigmoid)
    acts = tuple("sigmoid" if li == num_layers - 1 else "relu"
                 for li in range(num_layers))

    fused = _fuse_params_bf16(params, num_rels)
    flat_wb = [arr for pair in fused for arr in pair]
    adj_bf16 = jnp.asarray(adj, jnp.bfloat16)        # (R, N, N), no identity
    out_lanes = LANE

    kernel = functools.partial(fused_rgcn_select_kernel,
                               num_rels=num_rels, acts=acts,
                               out_lanes=out_lanes)

    @jax.jit
    def forward(x, base_index):
        g = base_index.shape[0]
        g_pad = max(8, ((g + 7) // 8) * 8)            # >= 8 sublanes
        idx_pad = jnp.full((g_pad, 1), -1, jnp.int32)
        idx_pad = idx_pad.at[:g, 0].set(base_index.astype(jnp.int32))

        out = pl.pallas_call(
            kernel,
            out_shape=jax.ShapeDtypeStruct((g_pad, out_lanes), jnp.float32),
            in_specs=[pl.BlockSpec(memory_space=pltpu.MemorySpace.VMEM)]
            * (3 + len(flat_wb)),
            out_specs=pl.BlockSpec(memory_space=pltpu.MemorySpace.VMEM),
            compiler_params=pltpu.CompilerParams(
                vmem_limit_bytes=64 * 1024 * 1024),
        )(idx_pad, adj_bf16, jnp.asarray(x, jnp.float32), *flat_wb)
        # lane-dense (G_pad, 128) store in-kernel; keep only real rows/classes
        return out[:g, :n_classes]

    return forward


# -----------------------------------------------------------------------------
# Pure-JAX reference (for a correctness check)
# -----------------------------------------------------------------------------
def select_gnn_reference(params, adj, x, base_index):
    hp = jax.lax.Precision.HIGHEST
    h = x
    nl = len(params)
    for li, (w_rel, w_self, bias) in enumerate(params):
        acc = jnp.dot(h, w_self, precision=hp)
        for r in range(adj.shape[0]):
            acc = acc + jnp.dot(adj[r], jnp.dot(h, w_rel[r], precision=hp),
                                precision=hp)
        acc = acc + bias
        h = jax.nn.sigmoid(acc) if li == nl - 1 else jnp.maximum(acc, 0.0)
    return h[base_index, :]


# -----------------------------------------------------------------------------
# Deterministic setup
# -----------------------------------------------------------------------------
def build_batched_graph(nodes_per_graph, num_graphs, num_rels):
    """Block-diagonal dense adjacency, row-normalized per relation."""
    n_total = nodes_per_graph * num_graphs
    adj = np.zeros((num_rels, n_total, n_total), dtype=np.float32)
    r_skip = 1 if num_rels > 1 else 0
    for g in range(num_graphs):
        off = g * nodes_per_graph
        for j in range(nodes_per_graph):
            src = off + j
            adj[0, off + (j + 1) % nodes_per_graph, src] = 1.0       # ring edge
            adj[r_skip, off + (j + 2) % nodes_per_graph, src] = 1.0  # skip edge
    deg = adj.sum(axis=2, keepdims=True)
    adj = adj / np.maximum(deg, 1.0)        # RGCN 1/c_{i,r} normalization
    return jnp.asarray(adj)


def init_rgcn_params(key, num_features, num_hidden, n_classes, num_rels,
                     gnn_layers):
    dims = [num_features] + [num_hidden] * (gnn_layers - 1) + [n_classes]
    params = []
    for li in range(gnn_layers):
        f_in, f_out = dims[li], dims[li + 1]
        key, k1, k2 = jax.random.split(key, 3)
        w_rel = 0.1 * jax.random.normal(k1, (num_rels, f_in, f_out),
                                        dtype=jnp.float32)
        w_self = 0.1 * jax.random.normal(k2, (f_in, f_out), dtype=jnp.float32)
        bias = jnp.zeros((1, f_out), dtype=jnp.float32)
        params.append((w_rel, w_self, bias))
    return params


if __name__ == "__main__":
    num_graphs = 2
    nodes_per_graph = 8
    n_total = num_graphs * nodes_per_graph     # 16 batched nodes
    num_features = 8
    num_hidden = 16
    n_classes = 2                              # SELECT_GNN output width
    num_rels = 2
    gnn_layers = 2

    key = jax.random.PRNGKey(0)
    key, kx = jax.random.split(key)

    # Node features of the batched graph ("data" argument).
    x = jax.random.normal(kx, (n_total, num_features), dtype=jnp.float32)

    # Batched graph structure ("g" / self.g).
    adj = build_batched_graph(nodes_per_graph, num_graphs, num_rels)

    # base_index for the unbatch/select loop: first node of each graph.
    base_index = jnp.arange(num_graphs, dtype=jnp.int32) * nodes_per_graph

    params = init_rgcn_params(key, num_features, num_hidden, n_classes,
                              num_rels, gnn_layers)

    forward = make_select_gnn_forward(params, adj, n_classes)

    out = jax.block_until_ready(forward(x, base_index))
    assert out.shape == (num_graphs, n_classes)

    ref = jax.block_until_ready(select_gnn_reference(params, adj, x, base_index))
    # bf16 MXU operands vs f32 HIGHEST reference: tolerance re-validated for
    # this scale (outputs in (0,1) post-sigmoid; observed error << 1e-2).
    assert float(jnp.max(jnp.abs(out - ref))) < 2e-2, (out, ref)

    print("KERNEL_OK")
</pallas_src>

<mosaic_0001>
module attributes {stable_mosaic.version = 11 : i64} {
  func.func @fused_rgcn_select_kernel(%arg0: memref<8x1xi32, #tpu.memory_space<vmem>>, %arg1: memref<2x16x16xbf16, #tpu.memory_space<vmem>>, %arg2: memref<16x8xf32, #tpu.memory_space<vmem>>, %arg3: memref<8x128xbf16, #tpu.memory_space<vmem>>, %arg4: memref<1x16xf32, #tpu.memory_space<vmem>>, %arg5: memref<16x128xbf16, #tpu.memory_space<vmem>>, %arg6: memref<1x2xf32, #tpu.memory_space<vmem>>, %arg7: memref<8x128xf32, #tpu.memory_space<vmem>>) attributes {dimension_semantics = [], scalar_prefetch = 0 : i64, scratch_operands = 0 : i64, tpu.core_type = #tpu.core_type<tc>} {
    %c0 = arith.constant 0 : index
    %c0_0 = arith.constant 0 : index
    %0 = vector.load %arg2[%c0, %c0_0] : memref<16x8xf32, #tpu.memory_space<vmem>>, vector<16x8xf32>
    %1 = arith.truncf %0 : vector<16x8xf32> to vector<16x8xbf16>
    %c0_1 = arith.constant 0 : index
    %c0_2 = arith.constant 0 : index
    %2 = vector.load %arg3[%c0_1, %c0_2] : memref<8x128xbf16, #tpu.memory_space<vmem>>, vector<8x128xbf16>
    %cst = arith.constant dense<0.000000e+00> : vector<16x128xf32>
    %3 = tpu.matmul %1, %2, %cst {dimension_numbers = #tpu.dot_dimension_numbers<[1], [0], [0], [1], [0, 0, 1, 1], [], []>} : vector<16x8xbf16>, vector<8x128xbf16>, vector<16x128xf32> -> vector<16x128xf32>
    %4 = vector.extract_strided_slice %3 {offsets = [0, 0], sizes = [16, 16], strides = [1, 1]} : vector<16x128xf32> to vector<16x16xf32>
    %5 = vector.extract_strided_slice %3 {offsets = [0, 16], sizes = [16, 16], strides = [1, 1]} : vector<16x128xf32> to vector<16x16xf32>
    %6 = arith.truncf %5 : vector<16x16xf32> to vector<16x16xbf16>
    %c0_3 = arith.constant 0 : index
    %c0_4 = arith.constant 0 : index
    %c0_5 = arith.constant 0 : index
    %7 = vector.load %arg1[%c0_3, %c0_4, %c0_5] : memref<2x16x16xbf16, #tpu.memory_space<vmem>>, vector<1x16x16xbf16>
    %8 = vector.shape_cast %7 : vector<1x16x16xbf16> to vector<16x16xbf16>
    %cst_6 = arith.constant dense<0.000000e+00> : vector<16x16xf32>
    %9 = tpu.matmul %8, %6, %cst_6 {dimension_numbers = #tpu.dot_dimension_numbers<[1], [0], [0], [1], [0, 0, 1, 1], [], []>} : vector<16x16xbf16>, vector<16x16xbf16>, vector<16x16xf32> -> vector<16x16xf32>
    %10 = arith.addf %4, %9 : vector<16x16xf32>
    %11 = vector.extract_strided_slice %3 {offsets = [0, 32], sizes = [16, 16], strides = [1, 1]} : vector<16x128xf32> to vector<16x16xf32>
    %12 = arith.truncf %11 : vector<16x16xf32> to vector<16x16xbf16>
    %c1 = arith.constant 1 : index
    %c0_7 = arith.constant 0 : index
    %c0_8 = arith.constant 0 : index
    %13 = vector.load %arg1[%c1, %c0_7, %c0_8] : memref<2x16x16xbf16, #tpu.memory_space<vmem>>, vector<1x16x16xbf16>
    %14 = vector.shape_cast %13 : vector<1x16x16xbf16> to vector<16x16xbf16>
    %cst_9 = arith.constant dense<0.000000e+00> : vector<16x16xf32>
    %15 = tpu.matmul %14, %12, %cst_9 {dimension_numbers = #tpu.dot_dimension_numbers<[1], [0], [0], [1], [0, 0, 1, 1], [], []>} : vector<16x16xbf16>, vector<16x16xbf16>, vector<16x16xf32> -> vector<16x16xf32>
    %16 = arith.addf %10, %15 : vector<16x16xf32>
    %c0_10 = arith.constant 0 : index
    %c0_11 = arith.constant 0 : index
    %17 = vector.load %arg4[%c0_10, %c0_11] : memref<1x16xf32, #tpu.memory_space<vmem>>, vector<1x16xf32>
    %18 = vector.broadcast %17 : vector<1x16xf32> to vector<16x16xf32>
    %19 = arith.addf %16, %18 : vector<16x16xf32>
    %cst_12 = arith.constant 0.000000e+00 : f32
    %20 = vector.broadcast %cst_12 : f32 to vector<16x16xf32>
    %21 = arith.maximumf %19, %20 : vector<16x16xf32>
    %22 = arith.truncf %21 : vector<16x16xf32> to vector<16x16xbf16>
    %c0_13 = arith.constant 0 : index
    %c0_14 = arith.constant 0 : index
    %23 = vector.load %arg5[%c0_13, %c0_14] : memref<16x128xbf16, #tpu.memory_space<vmem>>, vector<16x128xbf16>
    %cst_15 = arith.constant dense<0.000000e+00> : vector<16x128xf32>
    %24 = tpu.matmul %22, %23, %cst_15 {dimension_numbers = #tpu.dot_dimension_numbers<[1], [0], [0], [1], [0, 0, 1, 1], [], []>} : vector<16x16xbf16>, vector<16x128xbf16>, vector<16x128xf32> -> vector<16x128xf32>
    %25 = vector.extract_strided_slice %24 {offsets = [0, 0], sizes = [16, 2], strides = [1, 1]} : vector<16x128xf32> to vector<16x2xf32>
    %26 = vector.extract_strided_slice %24 {offsets = [0, 2], sizes = [16, 2], strides = [1, 1]} : vector<16x128xf32> to vector<16x2xf32>
    %27 = arith.truncf %26 : vector<16x2xf32> to vector<16x2xbf16>
    %c0_16 = arith.constant 0 : index
    %c0_17 = arith.constant 0 : index
    %c0_18 = arith.constant 0 : index
    %28 = vector.load %arg1[%c0_16, %c0_17, %c0_18] : memref<2x16x16xbf16, #tpu.memory_space<vmem>>, vector<1x16x16xbf16>
    %29 = vector.shape_cast %28 : vector<1x16x16xbf16> to vector<16x16xbf16>
    %cst_19 = arith.constant dense<0.000000e+00> : vector<16x2xf32>
    %30 = tpu.matmul %29, %27, %cst_19 {dimension_numbers = #tpu.dot_dimension_numbers<[1], [0], [0], [1], [0, 0, 1, 1], [], []>} : vector<16x16xbf16>, vector<16x2xbf16>, vector<16x2xf32> -> vector<16x2xf32>
    %31 = arith.addf %25, %30 : vector<16x2xf32>
    %32 = vector.extract_strided_slice %24 {offsets = [0, 4], sizes = [16, 2], strides = [1, 1]} : vector<16x128xf32> to vector<16x2xf32>
    %33 = arith.truncf %32 : vector<16x2xf32> to vector<16x2xbf16>
    %c1_20 = arith.constant 1 : index
    %c0_21 = arith.constant 0 : index
    %c0_22 = arith.constant 0 : index
    %34 = vector.load %arg1[%c1_20, %c0_21, %c0_22] : memref<2x16x16xbf16, #tpu.memory_space<vmem>>, vector<1x16x16xbf16>
    %35 = vector.shape_cast %34 : vector<1x16x16xbf16> to vector<16x16xbf16>
    %cst_23 = arith.constant dense<0.000000e+00> : vector<16x2xf32>
    %36 = tpu.matmul %35, %33, %cst_23 {dimension_numbers = #tpu.dot_dimension_numbers<[1], [0], [0], [1], [0, 0, 1, 1], [], []>} : vector<16x16xbf16>, vector<16x2xbf16>, vector<16x2xf32> -> vector<16x2xf32>
    %37 = arith.addf %31, %36 : vector<16x2xf32>
    %c0_24 = arith.constant 0 : index
    %c0_25 = arith.constant 0 : index
    %38 = vector.load %arg6[%c0_24, %c0_25] : memref<1x2xf32, #tpu.memory_space<vmem>>, vector<1x2xf32>
    %39 = vector.broadcast %38 : vector<1x2xf32> to vector<16x2xf32>
    %40 = arith.addf %37, %39 : vector<16x2xf32>
    %41 = arith.negf %40 : vector<16x2xf32>
    %42 = math.exp %41 : vector<16x2xf32>
    %cst_26 = arith.constant 1.000000e+00 : f32
    %43 = vector.broadcast %cst_26 : f32 to vector<16x2xf32>
    %44 = arith.addf %43, %42 : vector<16x2xf32>
    %45 = arith.divf %43, %44 : vector<16x2xf32>
    %46 = tpu.iota {dimensions = array<i32: 1>} : vector<8x16xi32>
    %c0_27 = arith.constant 0 : index
    %c0_28 = arith.constant 0 : index
    %47 = vector.load %arg0[%c0_27, %c0_28] : memref<8x1xi32, #tpu.memory_space<vmem>>, vector<8x1xi32>
    %48 = vector.broadcast %47 : vector<8x1xi32> to vector<8x16xi32>
    %49 = arith.cmpi eq, %46, %48 : vector<8x16xi32>
    %50 = arith.extui %49 : vector<8x16xi1> to vector<8x16xi32>
    %51 = arith.sitofp %50 : vector<8x16xi32> to vector<8x16xf32>
    %cst_29 = arith.constant dense<0.000000e+00> : vector<8x2xf32>
    %52 = tpu.matmul %51, %45, %cst_29 {dimension_numbers = #tpu.dot_dimension_numbers<[1], [0], [0], [1], [0, 0, 1, 1], [], []>} : vector<8x16xf32>, vector<16x2xf32>, vector<8x2xf32> -> vector<8x2xf32>
    %cst_30 = arith.constant 0.000000e+00 : f32
    %53 = vector.broadcast %cst_30 : f32 to vector<8x126xf32>
    %54 = tpu.concatenate %52, %53 in 1 : vector<8x2xf32>, vector<8x126xf32> -> vector<8x128xf32>
    %c0_31 = arith.constant 0 : index
    %c0_32 = arith.constant 0 : index
    %55 = vector.load %arg7[%c0_31, %c0_32] : memref<8x128xf32, #tpu.memory_space<vmem>>, vector<8x128xf32>
    tpu.vector_store %arg7[%c0_31, %c0_32], %54 {strides = array<i32>} : memref<8x128xf32, #tpu.memory_space<vmem>>, vector<8x128xf32>,
    return
  }
}

</mosaic_0001>

<llo_original>
// kernel: forward.1
$region0: #{forward.1}
  #allocation0 [shape = 'u32[]', space=smem, size = 0x4, offset = 0x4, fixed_abs, tag = 'smem constant byte address 0x4 - core index']
  #allocation1 [shape = 'u32[144,128]{1,0:T(1,128)}', space=vmem, size = 0x12000, scoped, tag = 'internal scratch']
  %s0 = inlined_call_operand.vmem [shape: s32[8,1], index: 0, kind: input, shape index: {}]
  %s1 = inlined_call_operand.vmem [shape: bf16[2,16,16], index: 1, kind: input, shape index: {}]
  %s2 = inlined_call_operand.vmem [shape: f32[16,8], index: 2, kind: input, shape index: {}]
  %s3 = inlined_call_operand.vmem [shape: bf16[8,128], index: 3, kind: input, shape index: {}]
  %s4 = inlined_call_operand.vmem [shape: f32[1,16], index: 4, kind: input, shape index: {}]
  %s5 = inlined_call_operand.vmem [shape: bf16[16,128], index: 5, kind: input, shape index: {}]
  %s6 = inlined_call_operand.vmem [shape: f32[1,2], index: 6, kind: input, shape index: {}]
  %s7 = inlined_call_operand.vmem [shape: f32[8,128], index: 7, kind: output, shape index: {}]
  %s8 = sld [smem:[#allocation0]]
  $region38: #{forward.1} parent=0
    _
  %s10 = ssub.s32 1, %s8
  %s11 = scalar_select 0, %s10, %s8
  // Predicated region
  $region2: #{forward.1} parent=0 // pred_check
    _
  $region3: #{forward.1} parent=0 // pred_check_branch
    %13 = sbr.rel (0) target = $region5
  $region4: #{forward.1} parent=0 // pred_region
    _
  $region5: #{forward.1} parent=0 // pred_fallthru
    _
  // Predicated region
  $region6: #{forward.1} parent=0 // pred_check
    _
  $region7: #{forward.1} parent=0 // pred_check_branch
    %15 = sbr.rel (0) target = $region9
  $region8: #{forward.1} parent=0 // pred_region
    _
  $region9: #{forward.1} parent=0 // pred_fallthru
    _
  // Predicated region
  $region10: #{forward.1} parent=0 // pred_check
    _
  $region11: #{forward.1} parent=0 // pred_check_branch
    %17 = sbr.rel (0) target = $region13
  $region12: #{forward.1} parent=0 // pred_region
    _
  $region13: #{forward.1} parent=0 // pred_fallthru
    _
  // Predicated region
  $region14: #{forward.1} parent=0 // pred_check
    _
  $region15: #{forward.1} parent=0 // pred_check_branch
    %19 = sbr.rel (0) target = $region17
  $region16: #{forward.1} parent=0 // pred_region
    _
  $region17: #{forward.1} parent=0 // pred_fallthru
    _
  // Predicated region
  $region18: #{forward.1} parent=0 // pred_check
    _
  $region19: #{forward.1} parent=0 // pred_check_branch
    %21 = sbr.rel (0) target = $region21
  $region20: #{forward.1} parent=0 // pred_region
    _
  $region21: #{forward.1} parent=0 // pred_fallthru
    _
  // Predicated region
  $region22: #{forward.1} parent=0 // pred_check
    _
  $region23: #{forward.1} parent=0 // pred_check_branch
    %23 = sbr.rel (0) target = $region25
  $region24: #{forward.1} parent=0 // pred_region
    _
  $region25: #{forward.1} parent=0 // pred_fallthru
    _
  // Predicated region
  $region26: #{forward.1} parent=0 // pred_check
    _
  $region27: #{forward.1} parent=0 // pred_check_branch
    %25 = sbr.rel (0) target = $region29
  $region28: #{forward.1} parent=0 // pred_region
    _
  $region29: #{forward.1} parent=0 // pred_fallthru
    _
  %v27 = vld [vmem:[%s2] sm:$0xff]
  %v28 = vld [vmem:[%s2 + $0x8] sm:$0xff]
  %v29 = vpack.c.bf16 %v28, %v27
  %v30 = vld [vmem:[%s3] sm:$0xf]
  %vm31 = vcmask 64512
  %v33 = vsel %vm31, %v29, 0
  %vm35 = vcmask 1043456
  %v37 = vsel %vm35, %v30, 0
  %39 = vmatprep.subr.bf16.mxu0 0
  %40 = vmatpush1.bf16.msra.mxu0 0
  %41 = vmatprep.subr.bf16.mxu0 0
  %42 = vmatpush1.bf16.msra.mxu0 0
  %43 = vmatprep.subr.bf16.mxu0 0
  %44 = vmatpush1.bf16.msra.mxu0 0
  %45 = vmatprep.subr.bf16.mxu0 0
  %46 = vmatpush1.bf16.msra.mxu0 0
  %47 = vmatprep.subr.bf16.mxu0 0
  %48 = vmatpush1.bf16.msra.mxu0 0
  %49 = vmatprep.subr.bf16.mxu0 0
  %50 = vmatpush1.bf16.msra.mxu0 0
  %51 = vmatprep.subr.bf16.mxu0 0
  %52 = vmatpush1.bf16.msra.mxu0 0
  %53 = vmatprep.subr.bf16.mxu0 0
  %54 = vmatpush1.bf16.msra.mxu0 %v37
  %55 = vmatprep.subr.bf16.mxu0 0
  %56 = vmatpush2.bf16.msra.mxu0 0
  %57 = vmatprep.subr.bf16.mxu0 0
  %58 = vmatpush2.bf16.msra.mxu0 0
  %59 = vmatprep.subr.bf16.mxu0 0
  %60 = vmatpush2.bf16.msra.mxu0 0
  %61 = vmatprep.subr.bf16.mxu0 0
  %62 = vmatpush2.bf16.msra.mxu0 0
  %63 = vmatprep.subr.bf16.mxu0 0
  %64 = vmatpush2.bf16.msra.mxu0 0
  %65 = vmatprep.subr.bf16.mxu0 0
  %66 = vmatpush2.bf16.msra.mxu0 0
  %67 = vmatprep.subr.bf16.mxu0 0
  %68 = vmatpush2.bf16.msra.mxu0 0
  %69 = vmatprep.subr.bf16.mxu0 0
  %70 = vmatpush2.bf16.msra.mxu0 0
  %71 = vmatprep.mubr.bf16.mxu0 0
  %72 = vmatmul.mubr.bf16.gmra.mxu0 %v33
  %v73 = vpop.f32.mrf.mxu0
  %v74 = vadd.f32 0.0, %v73
  %v75 = vpop.f32.mrf.mxu0
  %v76 = vpop.f32.mrf.mxu0
  %v77 = vadd.f32 0.0, %v76
  %v78 = vpop.f32.mrf.mxu0
  %79 = vdwg.mxu0
  %v80 = vpack.c.bf16 %v77, %v74
  %v81 = vld [vmem:[%s1] sm:$0xf]
  %v82 = vld [vmem:[%s1 + $0x4] sm:$0xf]
  %v85 = vunpack.c.l.b16 %v81
  %v86 = vunpack.c.l.b16 %v82
  %v87 = vpack.c.b16 %v86, %v85
  %89 = vrot.lane.b32.xlu0 %v80, 112
  %v90 = vpop.permute.xlu0 %89
  %vm92 = vcmask 130048
  %v94 = vsel %vm92, %v87, 0
  %96 = vmatprep.subr.bf16.mxu0 0
  %97 = vmatpush1.bf16.msra.mxu0 0
  %98 = vmatprep.subr.bf16.mxu0 0
  %99 = vmatpush1.bf16.msra.mxu0 0
  %100 = vmatprep.subr.bf16.mxu0 0
  %101 = vmatpush1.bf16.msra.mxu0 0
  %102 = vmatprep.subr.bf16.mxu0 0
  %103 = vmatpush1.bf16.msra.mxu0 0
  %104 = vmatprep.subr.bf16.mxu0 0
  %105 = vmatpush1.bf16.msra.mxu0 0
  %106 = vmatprep.subr.bf16.mxu0 0
  %107 = vmatpush1.bf16.msra.mxu0 0
  %108 = vmatprep.subr.bf16.mxu0 0
  %109 = vmatpush1.bf16.msra.mxu0 0
  %110 = vmatprep.subr.bf16.mxu0 0
  %111 = vmatpush1.bf16.msra.mxu0 %v90
  %112 = vmatprep.subr.bf16.mxu0 0
  %113 = vmatpush2.bf16.msra.mxu0 0
  %114 = vmatprep.subr.bf16.mxu0 0
  %115 = vmatpush2.bf16.msra.mxu0 0
  %116 = vmatprep.subr.bf16.mxu0 0
  %117 = vmatpush2.bf16.msra.mxu0 0
  %118 = vmatprep.subr.bf16.mxu0 0
  %119 = vmatpush2.bf16.msra.mxu0 0
  %120 = vmatprep.subr.bf16.mxu0 0
  %121 = vmatpush2.bf16.msra.mxu0 0
  %122 = vmatprep.subr.bf16.mxu0 0
  %123 = vmatpush2.bf16.msra.mxu0 0
  %124 = vmatprep.subr.bf16.mxu0 0
  %125 = vmatpush2.bf16.msra.mxu0 0
  %126 = vmatprep.subr.bf16.mxu0 0
  %127 = vmatpush2.bf16.msra.mxu0 0
  %128 = vmatprep.mubr.bf16.mxu0 0
  %129 = vmatmul.mubr.bf16.gmra.mxu0 %v94
  %v130 = vpop.f32.mrf.mxu0
  %v131 = vadd.f32 0.0, %v130
  %v132 = vpop.f32.mrf.mxu0
  %v133 = vpop.f32.mrf.mxu0
  %v134 = vadd.f32 0.0, %v133
  %v135 = vpop.f32.mrf.mxu0
  %136 = vdwg.mxu0
  %v137 = vadd.f32 %v74, %v131
  %v138 = vadd.f32 %v77, %v134
  %s139 = scalar_lea.vmem %s1, 8
  %v140 = vld [vmem:[%s139] sm:$0xf]
  %v141 = vld [vmem:[%s139 + $0x4] sm:$0xf]
  %v144 = vunpack.c.l.b16 %v140
  %v145 = vunpack.c.l.b16 %v141
  %v146 = vpack.c.b16 %v145, %v144
  %147 = vrot.lane.b32.xlu0 %v80, 96
  %v148 = vpop.permute.xlu0 %147
  %v151 = vsel %vm92, %v146, 0
  %153 = vmatprep.subr.bf16.mxu0 0
  %154 = vmatpush1.bf16.msra.mxu0 0
  %155 = vmatprep.subr.bf16.mxu0 0
  %156 = vmatpush1.bf16.msra.mxu0 0
  %157 = vmatprep.subr.bf16.mxu0 0
  %158 = vmatpush1.bf16.msra.mxu0 0
  %159 = vmatprep.subr.bf16.mxu0 0
  %160 = vmatpush1.bf16.msra.mxu0 0
  %161 = vmatprep.subr.bf16.mxu0 0
  %162 = vmatpush1.bf16.msra.mxu0 0
  %163 = vmatprep.subr.bf16.mxu0 0
  %164 = vmatpush1.bf16.msra.mxu0 0
  %165 = vmatprep.subr.bf16.mxu0 0
  %166 = vmatpush1.bf16.msra.mxu0 0
  %167 = vmatprep.subr.bf16.mxu0 0
  %168 = vmatpush1.bf16.msra.mxu0 %v148
  %169 = vmatprep.subr.bf16.mxu0 0
  %170 = vmatpush2.bf16.msra.mxu0 0
  %171 = vmatprep.subr.bf16.mxu0 0
  %172 = vmatpush2.bf16.msra.mxu0 0
  %173 = vmatprep.subr.bf16.mxu0 0
  %174 = vmatpush2.bf16.msra.mxu0 0
  %175 = vmatprep.subr.bf16.mxu0 0
  %176 = vmatpush2.bf16.msra.mxu0 0
  %177 = vmatprep.subr.bf16.mxu0 0
  %178 = vmatpush2.bf16.msra.mxu0 0
  %179 = vmatprep.subr.bf16.mxu0 0
  %180 = vmatpush2.bf16.msra.mxu0 0
  %181 = vmatprep.subr.bf16.mxu0 0
  %182 = vmatpush2.bf16.msra.mxu0 0
  %183 = vmatprep.subr.bf16.mxu0 0
  %184 = vmatpush2.bf16.msra.mxu0 0
  %185 = vmatprep.mubr.bf16.mxu0 0
  %186 = vmatmul.mubr.bf16.gmra.mxu0 %v151
  %v187 = vpop.f32.mrf.mxu0
  %v188 = vadd.f32 0.0, %v187
  %v189 = vpop.f32.mrf.mxu0
  %v190 = vpop.f32.mrf.mxu0
  %v191 = vadd.f32 0.0, %v190
  %v192 = vpop.f32.mrf.mxu0
  %193 = vdwg.mxu0
  %v194 = vadd.f32 %v137, %v188
  %v195 = vadd.f32 %v138, %v191
  %v196 = vld [vmem:[%s4] sm:$0x1]
  %v198 = vlaneseq
  %v199 = vshrl.u32 %v198, 7
  %v200 = vsub.s32 0, %v199
  %v201 = vrot.slane %v196, %v200
  %v203 = vadd.f32 %v194, %v201
  %v204 = vadd.f32 %v195, %v201
  %v205 = vmax.f32 %v203, 0.0
  %v206 = vmax.f32 %v204, 0.0
  %v207 = vpack.c.bf16 %v206, %v205
  %v208 = vld [vmem:[%s5] sm:$0xf]
  %v209 = vld [vmem:[%s5 + $0x4] sm:$0xf]
  %v212 = vunpack.c.l.b16 %v208
  %v213 = vunpack.c.l.b16 %v209
  %v214 = vpack.c.b16 %v213, %v212
  %v217 = vsel %vm92, %v207, 0
  %219 = vmatprep.subr.bf16.mxu0 0
  %220 = vmatpush1.bf16.msra.mxu0 0
  %221 = vmatprep.subr.bf16.mxu0 0
  %222 = vmatpush1.bf16.msra.mxu0 0
  %223 = vmatprep.subr.bf16.mxu0 0
  %224 = vmatpush1.bf16.msra.mxu0 0
  %225 = vmatprep.subr.bf16.mxu0 0
  %226 = vmatpush1.bf16.msra.mxu0 0
  %227 = vmatprep.subr.bf16.mxu0 0
  %228 = vmatpush1.bf16.msra.mxu0 0
  %229 = vmatprep.subr.bf16.mxu0 0
  %230 = vmatpush1.bf16.msra.mxu0 0
  %231 = vmatprep.subr.bf16.mxu0 0
  %232 = vmatpush1.bf16.msra.mxu0 0
  %233 = vmatprep.subr.bf16.mxu0 0
  %234 = vmatpush1.bf16.msra.mxu0 %v214
  %235 = vmatprep.subr.bf16.mxu0 0
  %236 = vmatpush2.bf16.msra.mxu0 0
  %237 = vmatprep.subr.bf16.mxu0 0
  %238 = vmatpush2.bf16.msra.mxu0 0
  %239 = vmatprep.subr.bf16.mxu0 0
  %240 = vmatpush2.bf16.msra.mxu0 0
  %241 = vmatprep.subr.bf16.mxu0 0
  %242 = vmatpush2.bf16.msra.mxu0 0
  %243 = vmatprep.subr.bf16.mxu0 0
  %244 = vmatpush2.bf16.msra.mxu0 0
  %245 = vmatprep.subr.bf16.mxu0 0
  %246 = vmatpush2.bf16.msra.mxu0 0
  %247 = vmatprep.subr.bf16.mxu0 0
  %248 = vmatpush2.bf16.msra.mxu0 0
  %249 = vmatprep.subr.bf16.mxu0 0
  %250 = vmatpush2.bf16.msra.mxu0 0
  %251 = vmatprep.mubr.bf16.mxu0 0
  %252 = vmatmul.mubr.bf16.gmra.mxu0 %v217
  %v253 = vpop.f32.mrf.mxu0
  %v254 = vadd.f32 0.0, %v253
  %v255 = vpop.f32.mrf.mxu0
  %v256 = vpop.f32.mrf.mxu0
  %v257 = vadd.f32 0.0, %v256
  %v258 = vpop.f32.mrf.mxu0
  %259 = vdwg.mxu0
  %v260 = vpack.c.bf16 %v257, %v254
  %262 = vrot.lane.b32.xlu0 %v260, 126
  %v263 = vpop.permute.xlu0 %262
  %265 = vmatprep.subr.bf16.mxu0 0
  %266 = vmatpush1.bf16.msra.mxu0 0
  %267 = vmatprep.subr.bf16.mxu0 0
  %268 = vmatpush1.bf16.msra.mxu0 0
  %269 = vmatprep.subr.bf16.mxu0 0
  %270 = vmatpush1.bf16.msra.mxu0 0
  %271 = vmatprep.subr.bf16.mxu0 0
  %272 = vmatpush1.bf16.msra.mxu0 0
  %273 = vmatprep.subr.bf16.mxu0 0
  %274 = vmatpush1.bf16.msra.mxu0 0
  %275 = vmatprep.subr.bf16.mxu0 0
  %276 = vmatpush1.bf16.msra.mxu0 0
  %277 = vmatprep.subr.bf16.mxu0 0
  %278 = vmatpush1.bf16.msra.mxu0 0
  %279 = vmatprep.subr.bf16.mxu0 0
  %280 = vmatpush1.bf16.msra.mxu0 %v263
  %281 = vmatprep.subr.bf16.mxu0 0
  %282 = vmatpush2.bf16.msra.mxu0 0
  %283 = vmatprep.subr.bf16.mxu0 0
  %284 = vmatpush2.bf16.msra.mxu0 0
  %285 = vmatprep.subr.bf16.mxu0 0
  %286 = vmatpush2.bf16.msra.mxu0 0
  %287 = vmatprep.subr.bf16.mxu0 0
  %288 = vmatpush2.bf16.msra.mxu0 0
  %289 = vmatprep.subr.bf16.mxu0 0
  %290 = vmatpush2.bf16.msra.mxu0 0
  %291 = vmatprep.subr.bf16.mxu0 0
  %292 = vmatpush2.bf16.msra.mxu0 0
  %293 = vmatprep.subr.bf16.mxu0 0
  %294 = vmatpush2.bf16.msra.mxu0 0
  %295 = vmatprep.subr.bf16.mxu0 0
  %296 = vmatpush2.bf16.msra.mxu0 0
  %297 = vmatprep.mubr.bf16.mxu0 0
  %298 = vmatmul.mubr.bf16.gmra.mxu0 %v94
  %v299 = vpop.f32.mrf.mxu0
  %v300 = vadd.f32 0.0, %v299
  %v301 = vpop.f32.mrf.mxu0
  %v302 = vpop.f32.mrf.mxu0
  %v303 = vadd.f32 0.0, %v302
  %v304 = vpop.f32.mrf.mxu0
  %305 = vdwg.mxu0
  %v306 = vadd.f32 %v254, %v300
  %v307 = vadd.f32 %v257, %v303
  %308 = vrot.lane.b32.xlu0 %v260, 124
  %v309 = vpop.permute.xlu0 %308
  %311 = vmatprep.subr.bf16.mxu0 0
  %312 = vmatpush1.bf16.msra.mxu0 0
  %313 = vmatprep.subr.bf16.mxu0 0
  %314 = vmatpush1.bf16.msra.mxu0 0
  %315 = vmatprep.subr.bf16.mxu0 0
  %316 = vmatpush1.bf16.msra.mxu0 0
  %317 = vmatprep.subr.bf16.mxu0 0
  %318 = vmatpush1.bf16.msra.mxu0 0
  %319 = vmatprep.subr.bf16.mxu0 0
  %320 = vmatpush1.bf16.msra.mxu0 0
  %321 = vmatprep.subr.bf16.mxu0 0
  %322 = vmatpush1.bf16.msra.mxu0 0
  %323 = vmatprep.subr.bf16.mxu0 0
  %324 = vmatpush1.bf16.msra.mxu0 0
  %325 = vmatprep.subr.bf16.mxu0 0
  %326 = vmatpush1.bf16.msra.mxu0 %v309
  %327 = vmatprep.subr.bf16.mxu0 0
  %328 = vmatpush2.bf16.msra.mxu0 0
  %329 = vmatprep.subr.bf16.mxu0 0
  %330 = vmatpush2.bf16.msra.mxu0 0
  %331 = vmatprep.subr.bf16.mxu0 0
  %332 = vmatpush2.bf16.msra.mxu0 0
  %333 = vmatprep.subr.bf16.mxu0 0
  %334 = vmatpush2.bf16.msra.mxu0 0
  %335 = vmatprep.subr.bf16.mxu0 0
  %336 = vmatpush2.bf16.msra.mxu0 0
  %337 = vmatprep.subr.bf16.mxu0 0
  %338 = vmatpush2.bf16.msra.mxu0 0
  %339 = vmatprep.subr.bf16.mxu0 0
  %340 = vmatpush2.bf16.msra.mxu0 0
  %341 = vmatprep.subr.bf16.mxu0 0
  %342 = vmatpush2.bf16.msra.mxu0 0
  %343 = vmatprep.mubr.bf16.mxu0 0
  %344 = vmatmul.mubr.bf16.gmra.mxu0 %v151
  %v345 = vpop.f32.mrf.mxu0
  %v346 = vadd.f32 0.0, %v345
  %v347 = vpop.f32.mrf.mxu0
  %v348 = vpop.f32.mrf.mxu0
  %v349 = vadd.f32 0.0, %v348
  %v350 = vpop.f32.mrf.mxu0
  %351 = vdwg.mxu0
  %v352 = vadd.f32 %v306, %v346
  %v353 = vadd.f32 %v307, %v349
  %v354 = vld [vmem:[%s6] sm:$0x1]
  %v356 = vlaneseq
  %v357 = vshrl.u32 %v356, 7
  %v358 = vsub.s32 0, %v357
  %v359 = vrot.slane %v354, %v358
  %v361 = vadd.f32 %v352, %v359
  %v362 = vadd.f32 %v353, %v359
  %v363 = vxor.u32 %v361, 2147483648
  %v364 = vxor.u32 %v362, 2147483648
  %v365 = vmul.f32 %v363, 1.442695
  %v366 = vpow.pop %v365
  %v367 = vmul.f32 %v364, 1.442695
  %v368 = vpow.pop %v367
  %v369 = vadd.f32 %v366, 1.0
  %v370 = vadd.f32 %v368, 1.0
  %v371 = vrcp.pop %v369
  %v372 = vmul.f32 1.0, %v371
  %v373 = vrcp.pop %v370
  %v374 = vmul.f32 1.0, %v373
  %v375 = vlaneseq
  %v376 = vand.u32 %v375, 127
  %v377 = vld [vmem:[%s0] sm:$0xff]
  %378 = vset.pattern.permute.xlu0 0
  %379 = vperm.xlu0 %378, %v377
  %v380 = vpop.permute.xlu0 %379
  %vm381 = vcmp.eq.s32.totalorder %v376, %v380
  %v382 = vsel %vm381, 1, 0
  %v383 = vcvt.s32.f32 %v382
  %v385 = vsel %vm92, %v383, 0
  %387 = vmatprep.subr.mxu0 0.0
  %388 = vmatpush1.msra.mxu0 0.0
  %389 = vmatprep.subr.mxu0 0.0
  %390 = vmatpush1.msra.mxu0 0.0
  %391 = vmatprep.subr.mxu0 0.0
  %392 = vmatpush1.msra.mxu0 0.0
  %393 = vmatprep.subr.mxu0 0.0
  %394 = vmatpush1.msra.mxu0 0.0
  %395 = vmatprep.subr.mxu0 0.0
  %396 = vmatpush1.msra.mxu0 0.0
  %397 = vmatprep.subr.mxu0 0.0
  %398 = vmatpush1.msra.mxu0 0.0
  %399 = vmatprep.subr.mxu0 0.0
  %400 = vmatpush1.msra.mxu0 0.0
  %401 = vmatprep.subr.mxu0 0.0
  %402 = vmatpush1.msra.mxu0 0.0
  %403 = vmatprep.subr.mxu0 0.0
  %404 = vmatpush1.msra.mxu0 0.0
  %405 = vmatprep.subr.mxu0 0.0
  %406 = vmatpush1.msra.mxu0 0.0
  %407 = vmatprep.subr.mxu0 0.0
  %408 = vmatpush1.msra.mxu0 0.0
  %409 = vmatprep.subr.mxu0 0.0
  %410 = vmatpush1.msra.mxu0 0.0
  %411 = vmatprep.subr.mxu0 0.0
  %412 = vmatpush1.msra.mxu0 0.0
  %413 = vmatprep.subr.mxu0 0.0
  %414 = vmatpush1.msra.mxu0 0.0
  %415 = vmatprep.subr.mxu0 0.0
  %416 = vmatpush1.msra.mxu0 %v374
  %417 = vmatprep.subr.mxu0 0.0
  %418 = vmatpush1.msra.mxu0 %v372
  %419 = vmatprep.subr.mxu0 0.0
  %420 = vmatpush2.msra.mxu0 0.0
  %421 = vmatprep.subr.mxu0 0.0
  %422 = vmatpush2.msra.mxu0 0.0
  %423 = vmatprep.subr.mxu0 0.0
  %424 = vmatpush2.msra.mxu0 0.0
  %425 = vmatprep.subr.mxu0 0.0
  %426 = vmatpush2.msra.mxu0 0.0
  %427 = vmatprep.subr.mxu0 0.0
  %428 = vmatpush2.msra.mxu0 0.0
  %429 = vmatprep.subr.mxu0 0.0
  %430 = vmatpush2.msra.mxu0 0.0
  %431 = vmatprep.subr.mxu0 0.0
  %432 = vmatpush2.msra.mxu0 0.0
  %433 = vmatprep.subr.mxu0 0.0
  %434 = vmatpush2.msra.mxu0 0.0
  %435 = vmatprep.subr.mxu0 0.0
  %436 = vmatpush2.msra.mxu0 0.0
  %437 = vmatprep.subr.mxu0 0.0
  %438 = vmatpush2.msra.mxu0 0.0
  %439 = vmatprep.subr.mxu0 0.0
  %440 = vmatpush2.msra.mxu0 0.0
  %441 = vmatprep.subr.mxu0 0.0
  %442 = vmatpush2.msra.mxu0 0.0
  %443 = vmatprep.subr.mxu0 0.0
  %444 = vmatpush2.msra.mxu0 0.0
  %445 = vmatprep.subr.mxu0 0.0
  %446 = vmatpush2.msra.mxu0 0.0
  %447 = vmatprep.subr.mxu0 0.0
  %448 = vmatpush2.msra.mxu0 0.0
  %449 = vmatprep.subr.mxu0 0.0
  %450 = vmatpush2.msra.mxu0 0.0
  %451 = vmatprep.mubr.f32.mxu0 0.0
  %452 = vmatmul.mubr.f32.gmra.mxu0 %v385
  %v453 = vpop.f32.mrf.mxu0
  %v454 = vadd.f32 0.0, %v453
  %v455 = vpop.f32.mrf.mxu0
  %456 = vdwg.mxu0
  %vm457 = vcmask 15360
  %v458 = vsel %vm457, %v454, 0.0
  %459 = vst [vmem:[%s7] sm:$0xff] %v458
  // Predicated region
  $region30: #{forward.1} parent=0 // pred_check
    _
  $region31: #{forward.1} parent=0 // pred_check_branch
    %461 = sbr.rel (0) target = $region33
  $region32: #{forward.1} parent=0 // pred_region
    _
  $region33: #{forward.1} parent=0 // pred_fallthru
    _
  // Predicated region
  $region34: #{forward.1} parent=0 // pred_check
    _
  $region35: #{forward.1} parent=0 // pred_check_branch
    %463 = sbr.rel (0) target = $region37
  $region36: #{forward.1} parent=0 // pred_region
    _
  $region37: #{forward.1} parent=0 // pred_fallthru
    _

</llo_original>
